<compile_context>
chip_gen: v6e
topology: v6e:2x2x1
jax: 0.10.0
libtpu: 0.0.40
codegen_flags: <defaults>
</compile_context>

<pallas_src>
import functools

import jax
import jax.numpy as jnp
from jax import lax
from jax.experimental import pallas as pl
from jax.experimental.pallas import tpu as pltpu

_LANES = 512        # lane-dense slab width (large multiple of 128)
_TILE_ROWS = 1024   # 1024 x 512 x 4B = 2 MiB per f32 block -> v7x-safe


def _mix_u32(x):
    """32-bit murmur3/splitmix-style finalizer (pure VPU integer ops)."""
    x = x ^ (x >> 16)
    x = x * jnp.uint32(0x7FEB352D)
    x = x ^ (x >> 15)
    x = x * jnp.uint32(0x846CA68B)
    x = x ^ (x >> 16)
    return x


def _fixed_dropout_kernel(seed_ref, x_ref, o_ref, *, p, tile_rows, lanes):
    shape = x_ref.shape

    # Global element index of every entry in this tile (counter for the hash).
    row = lax.broadcasted_iota(jnp.int32, shape, 0)
    col = lax.broadcasted_iota(jnp.int32, shape, 1)
    g_row = pl.program_id(0) * tile_rows + row
    counter = g_row * lanes + col + seed_ref[0] * jnp.int32(1000003)

    # Counter-based PRNG: two mixing rounds over (index, seed).
    u = counter.astype(jnp.uint32)
    bits = _mix_u32(u * jnp.uint32(0x9E3779B1))
    bits = _mix_u32(bits ^ jnp.uint32(0x85EBCA6B))

    # Bug-compatible FixedDropout: drop with probability (1 - p),
    # scale survivors by 1 / (1 - p).
    drop_prob = 1.0 - p
    thresh = jnp.uint32(min(int(drop_prob * (2 ** 32)), 2 ** 32 - 1))
    drop_mask = bits < thresh

    scale = jnp.asarray(1.0 / (1.0 - p), dtype=x_ref.dtype)
    o_ref[...] = jnp.where(drop_mask, 0.0, x_ref[...]) * scale


def fixed_dropout(x, *, p=0.5, seed=0, training=True):
    """Pallas TPU implementation of FixedDropout.forward."""
    if not training:
        return x

    orig_shape = x.shape
    n = x.size
    itemsize = jnp.dtype(x.dtype).itemsize
    # Sublane alignment for sub-32-bit dtypes (8 for f32, 16 bf16, 32 int8).
    sublane = max(8, 32 // itemsize)
    lanes = _LANES

    # Pad the flattened array so rows is sublane-aligned and lane-dense.
    padded = pl.cdiv(n, lanes * sublane) * (lanes * sublane)
    rows = padded // lanes
    tile_rows = min(_TILE_ROWS, rows)   # both are multiples of `sublane`

    flat = x.reshape(-1)
    if padded != n:
        flat = jnp.pad(flat, (0, padded - n))
    x2d = flat.reshape(rows, lanes)

    seed_arr = jnp.array([seed], dtype=jnp.int32)
    kernel = functools.partial(
        _fixed_dropout_kernel, p=p, tile_rows=tile_rows, lanes=lanes)

    out2d = pl.pallas_call(
        kernel,
        out_shape=jax.ShapeDtypeStruct((rows, lanes), x.dtype),
        grid_spec=pltpu.PrefetchScalarGridSpec(
            num_scalar_prefetch=1,
            grid=(pl.cdiv(rows, tile_rows),),
            in_specs=[pl.BlockSpec((tile_rows, lanes), lambda i, s: (i, 0))],
            out_specs=pl.BlockSpec((tile_rows, lanes), lambda i, s: (i, 0)),
        ),
        compiler_params=pltpu.CompilerParams(
            dimension_semantics=("parallel",),
        ),
        cost_estimate=pl.CostEstimate(
            flops=0,
            transcendentals=0,
            bytes_accessed=2 * n * itemsize,
        ),
    )(seed_arr, x2d)

    out = out2d.reshape(-1)
    if padded != n:
        out = out[:n]
    return out.reshape(orig_shape)


if __name__ == "__main__":
    key = jax.random.PRNGKey(0)
    # Small NCHW input consistent with a conv-net feature map.
    x = jax.random.normal(key, (2, 4, 16, 16), dtype=jnp.float32)

    p = 0.5
    y = fixed_dropout(x, p=p, seed=1234, training=True)
    y = jax.block_until_ready(y)

    # Shape/dtype preserved; every element is either exactly 0 (dropped) or
    # x / (1 - p) (kept & scaled).
    assert y.shape == x.shape and y.dtype == x.dtype
    scaled = x / (1.0 - p)
    ok = jnp.all(jnp.logical_or(y == 0.0, jnp.isclose(y, scaled, rtol=1e-6)))
    assert bool(ok), "dropout output is neither zero nor scaled input"

    # Mask should be non-degenerate (drop prob = 1 - p = 0.5).
    frac_zero = float(jnp.mean((y == 0.0).astype(jnp.float32)))
    assert 0.05 < frac_zero < 0.95, f"degenerate dropout mask: {frac_zero}"

    # Eval mode path (identity).
    y_eval = fixed_dropout(x, p=p, training=False)
    assert bool(jnp.all(y_eval == x))

    print("KERNEL_OK")
</pallas_src>

<mosaic_0001>
module attributes {stable_mosaic.version = 11 : i64} {
  func.func @_fixed_dropout_kernel(%arg0: i32, %arg1: memref<1xi32, #tpu.memory_space<smem>>, %arg2: memref<8x512xf32, #tpu.memory_space<vmem>>, %arg3: memref<8x512xf32, #tpu.memory_space<vmem>>) attributes {dimension_semantics = [#tpu.dimension_semantics<parallel>], iteration_bounds = array<i64: 1>, scalar_prefetch = 1 : i64, scratch_operands = 0 : i64, tpu.core_type = #tpu.core_type<tc>, window_params = [{transform_indices = @transform_0, window_bounds = array<i64: 8, 512>}, {transform_indices = @transform_1, window_bounds = array<i64: 8, 512>}]} {
    %0 = tpu.iota {dimensions = array<i32: 0>} : vector<8x512xi32>
    %1 = tpu.iota {dimensions = array<i32: 1>} : vector<8x512xi32>
    %c8_i32 = arith.constant 8 : i32
    %2 = arith.muli %arg0, %c8_i32 : i32
    %3 = vector.broadcast %2 : i32 to vector<8x512xi32>
    %4 = arith.addi %3, %0 : vector<8x512xi32>
    %c512_i32 = arith.constant 512 : i32
    %5 = vector.broadcast %c512_i32 : i32 to vector<8x512xi32>
    %6 = arith.muli %4, %5 : vector<8x512xi32>
    %7 = arith.addi %6, %1 : vector<8x512xi32>
    %c0 = arith.constant 0 : index
    %8 = memref.load %arg1[%c0] : memref<1xi32, #tpu.memory_space<smem>>
    %c1000003_i32 = arith.constant 1000003 : i32
    %9 = arith.muli %8, %c1000003_i32 : i32
    %10 = vector.broadcast %9 : i32 to vector<8x512xi32>
    %11 = arith.addi %7, %10 : vector<8x512xi32>
    %c-1640531535_i32 = arith.constant -1640531535 : i32
    %12 = vector.broadcast %c-1640531535_i32 : i32 to vector<8x512xi32>
    %13 = arith.muli %11, %12 : vector<8x512xi32>
    %c16_i32 = arith.constant 16 : i32
    %14 = vector.broadcast %c16_i32 : i32 to vector<8x512xi32>
    %15 = arith.shrui %13, %14 : vector<8x512xi32>
    %16 = arith.xori %13, %15 : vector<8x512xi32>
    %c2146121005_i32 = arith.constant 2146121005 : i32
    %17 = vector.broadcast %c2146121005_i32 : i32 to vector<8x512xi32>
    %18 = arith.muli %16, %17 : vector<8x512xi32>
    %c15_i32 = arith.constant 15 : i32
    %19 = vector.broadcast %c15_i32 : i32 to vector<8x512xi32>
    %20 = arith.shrui %18, %19 : vector<8x512xi32>
    %21 = arith.xori %18, %20 : vector<8x512xi32>
    %c-2073254261_i32 = arith.constant -2073254261 : i32
    %22 = vector.broadcast %c-2073254261_i32 : i32 to vector<8x512xi32>
    %23 = arith.muli %21, %22 : vector<8x512xi32>
    %c16_i32_0 = arith.constant 16 : i32
    %24 = vector.broadcast %c16_i32_0 : i32 to vector<8x512xi32>
    %25 = arith.shrui %23, %24 : vector<8x512xi32>
    %26 = arith.xori %23, %25 : vector<8x512xi32>
    %c-2048144789_i32 = arith.constant -2048144789 : i32
    %27 = vector.broadcast %c-2048144789_i32 : i32 to vector<8x512xi32>
    %28 = arith.xori %26, %27 : vector<8x512xi32>
    %c16_i32_1 = arith.constant 16 : i32
    %29 = vector.broadcast %c16_i32_1 : i32 to vector<8x512xi32>
    %30 = arith.shrui %28, %29 : vector<8x512xi32>
    %31 = arith.xori %28, %30 : vector<8x512xi32>
    %c2146121005_i32_2 = arith.constant 2146121005 : i32
    %32 = vector.broadcast %c2146121005_i32_2 : i32 to vector<8x512xi32>
    %33 = arith.muli %31, %32 : vector<8x512xi32>
    %c15_i32_3 = arith.constant 15 : i32
    %34 = vector.broadcast %c15_i32_3 : i32 to vector<8x512xi32>
    %35 = arith.shrui %33, %34 : vector<8x512xi32>
    %36 = arith.xori %33, %35 : vector<8x512xi32>
    %c-2073254261_i32_4 = arith.constant -2073254261 : i32
    %37 = vector.broadcast %c-2073254261_i32_4 : i32 to vector<8x512xi32>
    %38 = arith.muli %36, %37 : vector<8x512xi32>
    %c16_i32_5 = arith.constant 16 : i32
    %39 = vector.broadcast %c16_i32_5 : i32 to vector<8x512xi32>
    %40 = arith.shrui %38, %39 : vector<8x512xi32>
    %41 = arith.xori %38, %40 : vector<8x512xi32>
    %c-2147483648_i32 = arith.constant -2147483648 : i32
    %42 = vector.broadcast %c-2147483648_i32 : i32 to vector<8x512xi32>
    %43 = arith.cmpi ult, %41, %42 : vector<8x512xi32>
    %c0_6 = arith.constant 0 : index
    %c0_7 = arith.constant 0 : index
    %44 = vector.load %arg2[%c0_6, %c0_7] : memref<8x512xf32, #tpu.memory_space<vmem>>, vector<8x512xf32>
    %cst = arith.constant 0.000000e+00 : f32
    %45 = vector.broadcast %cst : f32 to vector<8x512xf32>
    %46 = arith.select %43, %45, %44 : vector<8x512xi1>, vector<8x512xf32>
    %cst_8 = arith.constant 2.000000e+00 : f32
    %47 = vector.broadcast %cst_8 : f32 to vector<8x512xf32>
    %48 = arith.mulf %46, %47 : vector<8x512xf32>
    %c0_9 = arith.constant 0 : index
    %c0_10 = arith.constant 0 : index
    %49 = vector.load %arg3[%c0_9, %c0_10] : memref<8x512xf32, #tpu.memory_space<vmem>>, vector<8x512xf32>
    tpu.vector_store %arg3[%c0_9, %c0_10], %48 {strides = array<i32>} : memref<8x512xf32, #tpu.memory_space<vmem>>, vector<8x512xf32>,
    return
  }
  func.func @transform_0(%arg0: i32, %arg1: memref<1xi32, #tpu.memory_space<smem>>) -> (i32, i32) {
    %c0_i32 = arith.constant 0 : i32
    %c0_i32_0 = arith.constant 0 : i32
    return %arg0, %c0_i32 : i32, i32
  }
  func.func @transform_1(%arg0: i32, %arg1: memref<1xi32, #tpu.memory_space<smem>>) -> (i32, i32) {
    %c0_i32 = arith.constant 0 : i32
    %c0_i32_0 = arith.constant 0 : i32
    return %arg0, %c0_i32 : i32, i32
  }
}

</mosaic_0001>

<llo_original>
// kernel: tpu_custom_call.1
$region0: #{tpu_custom_call.1}
  #allocation0 [shape = 'u32[]', space=smem, size = 0x4, offset = 0x4, fixed_abs, tag = 'smem constant byte address 0x4 - core index']
  #allocation1 [shape = 'u32[144,128]{1,0:T(1,128)}', space=vmem, size = 0x12000, scoped, tag = 'internal scratch']
  #allocation2 [shape = 's32[1]{0}', space=sflag, size = 0x4, scoped, tag = 'scoped memory for tpu_custom_call.1']
  #allocation3 [shape = 's32[1]{0:T(128)S(6)}', space=smem, size = 0x200, scoped, tag = 'prefetched SMEM operand 0']
  %s0 = inlined_call_operand.<no memory space> [shape: s32[1], index: 0, kind: input, shape index: {}]
  %s1 = inlined_call_operand.hbm [shape: f32[8,512], index: 1, kind: input, shape index: {}]
  %s2 = inlined_call_operand.hbm [shape: f32[8,512], index: 2, kind: output, shape index: {}]
  %s3 = sld [smem:[#allocation0]]
  $region18: #{tpu_custom_call.1} parent=0
    _
  %s5 = ssub.s32 1, %s3
  %s6 = scalar_select 0, %s5, %s3
  %7 = sst [smem:[#allocation3]] %s0
  $region1: #{tpu_custom_call.1} parent=0
    #allocation4 [shape = 'u8[16384]{0}', space=vmem, size = 0x4000, scoped, tag = 'input window, operand 1, single buffered']
    #allocation5 [shape = 's32[1]{0}', space=sflag, size = 0x4, scoped, tag = 'scoped memory for tpu_custom_call.1']
    #allocation6 [shape = 's32[1]{0}', space=sflag, size = 0x4, scoped, tag = 'scoped memory for tpu_custom_call.1']
    #allocation7 [shape = 'u8[16384]{0}', space=vmem, size = 0x4000, scoped, tag = 'output window, operand 0, single buffered']
    %8 = vsyncpa [#allocation5], 0
    %9 = vsyncpa [#allocation6], 0
    // Predicated region
    $region2: #{tpu_custom_call.1} parent=1 // pred_check
      _
    $region3: #{tpu_custom_call.1} parent=1 // pred_check_branch
      %11 = sbr.rel (0) target = $region5
    $region4: #{tpu_custom_call.1} parent=1 // pred_region
      %s13 = ssub.s32 512, 512
      %14 = vsyncadd [#allocation5], %s13
      %s16 = sshll.u32 [#allocation4], 4
      %s17 = int_to_ptr.vmem [resolvable:$true] %s16
      %19 = dma.hbm_to_vmem [thread:$0]  %s1, 512, %s17, [#allocation5]
    $region5: #{tpu_custom_call.1} parent=1 // pred_fallthru
      _
    // Predicated region
    $region6: #{tpu_custom_call.1} parent=1 // pred_check
      _
    $region7: #{tpu_custom_call.1} parent=1 // pred_check_branch
      %21 = sbr.rel (0) target = $region9
    $region8: #{tpu_custom_call.1} parent=1 // pred_region
      %22 = dma.done [#allocation5], 512
    $region9: #{tpu_custom_call.1} parent=1 // pred_fallthru
      _
    %v23 = vlaneseq
    %v24 = vshrl.u32 %v23, 7
    %v25 = vlaneseq
    %v26 = vand.u32 %v25, 127
    %v27 = vadd.s32 %v26, 128
    %v28 = vadd.s32 %v26, 256
    %v29 = vadd.s32 %v26, 384
    %s30 = smul.u32 0, 8
    %v31 = vstv %s30
    %v32 = vadd.s32 %v31, %v24
    %v33 = vmul.u32 %v32, 512
    %v34 = vadd.s32 %v33, %v26
    %v35 = vadd.s32 %v33, %v27
    %v36 = vadd.s32 %v33, %v28
    %v37 = vadd.s32 %v33, %v29
    %s38 = sld [smem:[#allocation3]]
    %s39 = smul.u32 %s38, 1000003
    %v40 = vstv %s39
    %v41 = vadd.s32 %v34, %v40
    %v42 = vadd.s32 %v35, %v40
    %v43 = vadd.s32 %v36, %v40
    %v44 = vadd.s32 %v37, %v40
    %v45 = vmul.u32 %v41, 2654435761
    %v46 = vmul.u32 %v42, 2654435761
    %v47 = vmul.u32 %v43, 2654435761
    %v48 = vmul.u32 %v44, 2654435761
    %v49 = vshrl.u32 %v45, 16
    %v50 = vshrl.u32 %v46, 16
    %v51 = vshrl.u32 %v47, 16
    %v52 = vshrl.u32 %v48, 16
    %v53 = vxor.u32 %v45, %v49
    %v54 = vxor.u32 %v46, %v50
    %v55 = vxor.u32 %v47, %v51
    %v56 = vxor.u32 %v48, %v52
    %v57 = vmul.u32 %v53, 2146121005
    %v58 = vmul.u32 %v54, 2146121005
    %v59 = vmul.u32 %v55, 2146121005
    %v60 = vmul.u32 %v56, 2146121005
    %v61 = vshrl.u32 %v57, 15
    %v62 = vshrl.u32 %v58, 15
    %v63 = vshrl.u32 %v59, 15
    %v64 = vshrl.u32 %v60, 15
    %v65 = vxor.u32 %v57, %v61
    %v66 = vxor.u32 %v58, %v62
    %v67 = vxor.u32 %v59, %v63
    %v68 = vxor.u32 %v60, %v64
    %v69 = vmul.u32 %v65, 2221713035
    %v70 = vmul.u32 %v66, 2221713035
    %v71 = vmul.u32 %v67, 2221713035
    %v72 = vmul.u32 %v68, 2221713035
    %v73 = vshrl.u32 %v69, 16
    %v74 = vshrl.u32 %v70, 16
    %v75 = vshrl.u32 %v71, 16
    %v76 = vshrl.u32 %v72, 16
    %v77 = vxor.u32 %v69, %v73
    %v78 = vxor.u32 %v70, %v74
    %v79 = vxor.u32 %v71, %v75
    %v80 = vxor.u32 %v72, %v76
    %v81 = vxor.u32 %v77, 2246822507
    %v82 = vxor.u32 %v78, 2246822507
    %v83 = vxor.u32 %v79, 2246822507
    %v84 = vxor.u32 %v80, 2246822507
    %v85 = vshrl.u32 %v81, 16
    %v86 = vshrl.u32 %v82, 16
    %v87 = vshrl.u32 %v83, 16
    %v88 = vshrl.u32 %v84, 16
    %v89 = vxor.u32 %v81, %v85
    %v90 = vxor.u32 %v82, %v86
    %v91 = vxor.u32 %v83, %v87
    %v92 = vxor.u32 %v84, %v88
    %v93 = vmul.u32 %v89, 2146121005
    %v94 = vmul.u32 %v90, 2146121005
    %v95 = vmul.u32 %v91, 2146121005
    %v96 = vmul.u32 %v92, 2146121005
    %v97 = vshrl.u32 %v93, 15
    %v98 = vshrl.u32 %v94, 15
    %v99 = vshrl.u32 %v95, 15
    %v100 = vshrl.u32 %v96, 15
    %v101 = vxor.u32 %v93, %v97
    %v102 = vxor.u32 %v94, %v98
    %v103 = vxor.u32 %v95, %v99
    %v104 = vxor.u32 %v96, %v100
    %v105 = vmul.u32 %v101, 2221713035
    %v106 = vmul.u32 %v102, 2221713035
    %v107 = vmul.u32 %v103, 2221713035
    %v108 = vmul.u32 %v104, 2221713035
    %v109 = vshrl.u32 %v105, 16
    %v110 = vshrl.u32 %v106, 16
    %v111 = vshrl.u32 %v107, 16
    %v112 = vshrl.u32 %v108, 16
    %v113 = vxor.u32 %v105, %v109
    %v114 = vxor.u32 %v106, %v110
    %v115 = vxor.u32 %v107, %v111
    %v116 = vxor.u32 %v108, %v112
    %vm117 = vcmp.lt.u32.totalorder %v113, 2147483648
    %vm118 = vcmp.lt.u32.totalorder %v114, 2147483648
    %vm119 = vcmp.lt.u32.totalorder %v115, 2147483648
    %vm120 = vcmp.lt.u32.totalorder %v116, 2147483648
    %v121 = vld [vmem:[#allocation4] sm:$0xff]
    %v122 = vld [vmem:[#allocation4 + $0x8] sm:$0xff]
    %v123 = vld [vmem:[#allocation4 + $0x10] sm:$0xff]
    %v124 = vld [vmem:[#allocation4 + $0x18] sm:$0xff]
    %v125 = vsel %vm117, 0.0, %v121
    %v126 = vsel %vm118, 0.0, %v122
    %v127 = vsel %vm119, 0.0, %v123
    %v128 = vsel %vm120, 0.0, %v124
    %v129 = vmul.f32 %v125, 2.0
    %v130 = vmul.f32 %v126, 2.0
    %v131 = vmul.f32 %v127, 2.0
    %v132 = vmul.f32 %v128, 2.0
    %133 = vst [vmem:[#allocation7] sm:$0xff] %v129
    %134 = vst [vmem:[#allocation7 + $0x8] sm:$0xff] %v130
    %135 = vst [vmem:[#allocation7 + $0x10] sm:$0xff] %v131
    %136 = vst [vmem:[#allocation7 + $0x18] sm:$0xff] %v132
    // Predicated region
    $region10: #{tpu_custom_call.1} parent=1 // pred_check
      _
    $region11: #{tpu_custom_call.1} parent=1 // pred_check_branch
      %138 = sbr.rel (0) target = $region13
    $region12: #{tpu_custom_call.1} parent=1 // pred_region
      %s140 = ssub.s32 512, 512
      %141 = vsyncadd [#allocation6], %s140
      %s143 = sshll.u32 [#allocation7], 4
      %s144 = int_to_ptr.vmem [resolvable:$true] %s143
      %146 = dma.vmem_to_hbm [thread:$0]  %s144, 512, %s2, [#allocation6]
    $region13: #{tpu_custom_call.1} parent=1 // pred_fallthru
      _
    // Predicated region
    $region14: #{tpu_custom_call.1} parent=1 // pred_check
      _
    $region15: #{tpu_custom_call.1} parent=1 // pred_check_branch
      %148 = sbr.rel (0) target = $region17
    $region16: #{tpu_custom_call.1} parent=1 // pred_region
      %149 = dma.done [#allocation6], 512
    $region17: #{tpu_custom_call.1} parent=1 // pred_fallthru
      _
    %150 = vsyncpa [#allocation5], 1
    %151 = vsyncpa [#allocation6], 1

</llo_original>
